<compile_context>
chip_gen: v5e
topology: v5e:2x2
jax: 0.10.0
libtpu: 0.0.40
codegen_flags: <defaults>
</compile_context>

<pallas_src>
import functools

import jax
import jax.numpy as jnp
from jax.experimental import pallas as pl
from jax.experimental.pallas import tpu as pltpu

# ----- model hyperparameters (stand-ins for the Dreamer `globals` module) ----
STOCH_VECTOR_SIZE = 16
RECURRENT_VECTOR_SIZE = 16
MLP_SIZE = 32           # hidden_size
STATE_SPACE_SIZE = 16   # reconstruction target size
IN_SIZE = STOCH_VECTOR_SIZE + RECURRENT_VECTOR_SIZE


def _mlp_kernel(x_ref, w1_ref, b1_ref, w2_ref, b2_ref, w3_ref, b3_ref, o_ref):
    """3-layer MLP (relu, relu, linear) on one batch tile, all in VMEM."""
    x = x_ref[...]                                        # bf16 [tile, IN_SIZE]
    h1 = jnp.dot(x, w1_ref[...], preferred_element_type=jnp.float32) + b1_ref[...]
    h1 = jnp.maximum(h1, 0.0).astype(jnp.bfloat16)        # bf16 back into the MXU
    h2 = jnp.dot(h1, w2_ref[...], preferred_element_type=jnp.float32) + b2_ref[...]
    h2 = jnp.maximum(h2, 0.0).astype(jnp.bfloat16)
    o = jnp.dot(h2, w3_ref[...], preferred_element_type=jnp.float32) + b3_ref[...]
    o_ref[...] = o.astype(o_ref.dtype)


def _round_up(x, m):
    return ((x + m - 1) // m) * m


@functools.partial(jax.jit, static_argnames=("batch_tile",))
def reconstruction_forward(hiddens, params, batch_tile=1024):
    """hiddens: [B, IN_SIZE] float32 -> [B, STATE_SPACE_SIZE] float32."""
    w1, b1, w2, b2, w3, b3 = params
    B, D_in = hiddens.shape
    assert D_in == IN_SIZE

    # Tile selection (all static, shape-derived):
    #  * big tiles amortize per-grid-step overhead,
    #  * keep >=2 grid steps when the batch allows it (v7x megacore sharding),
    #  * multiple of 16 so bf16 activations land on full sublane tiles.
    tile = min(int(batch_tile), max(16, _round_up(max(B // 2, 1), 16)))
    tile = max(16, _round_up(tile, 16))
    B_pad = _round_up(B, tile)

    # bf16 activations/weights: ~2x less HBM traffic (mem-bound kernel);
    # f32 accumulation + f32 bias/ReLU preserved inside the kernel.
    x = hiddens.astype(jnp.bfloat16)
    if B_pad != B:
        x = jnp.pad(x, ((0, B_pad - B), (0, 0)))
    w1b, w2b, w3b = (w.astype(jnp.bfloat16) for w in (w1, w2, w3))
    b1f, b2f, b3f = (b.astype(jnp.float32) for b in (b1, b2, b3))

    grid = (B_pad // tile,)
    full = lambda i: (0, 0)      # weights/biases: same block every step (no re-DMA)
    batched = lambda i: (i, 0)   # activations: tiled along batch

    out = pl.pallas_call(
        _mlp_kernel,
        out_shape=jax.ShapeDtypeStruct((B_pad, STATE_SPACE_SIZE), jnp.float32),
        grid_spec=pltpu.PrefetchScalarGridSpec(
            num_scalar_prefetch=0,
            grid=grid,
            in_specs=[
                pl.BlockSpec((tile, IN_SIZE), batched),
                pl.BlockSpec((IN_SIZE, MLP_SIZE), full),
                pl.BlockSpec((1, MLP_SIZE), full),
                pl.BlockSpec((MLP_SIZE, MLP_SIZE), full),
                pl.BlockSpec((1, MLP_SIZE), full),
                pl.BlockSpec((MLP_SIZE, STATE_SPACE_SIZE), full),
                pl.BlockSpec((1, STATE_SPACE_SIZE), full),
            ],
            # TODO(synk): output last dim is 16 (<128 lanes) so stores are
            # masked; a lane-dense [16, B] layout would require the consumer
            # to accept a transposed result, so we keep [B, 16] semantics and
            # amortize the masked stores with the large batch tile.
            out_specs=pl.BlockSpec((tile, STATE_SPACE_SIZE), batched),
        ),
        compiler_params=pltpu.CompilerParams(
            dimension_semantics=("parallel",)),
    )(x, w1b, b1f, w2b, b2f, w3b, b3f)

    if B_pad != B:
        out = out[:B]
    return out


def init_params(key):
    """Deterministic init mirroring weight_init: W ~ N(0, sqrt(2/(fan_in+fan_out)))."""
    def linear(key, fan_in, fan_out):
        kw, kb = jax.random.split(key)
        std = jnp.sqrt(2.0 / (fan_in + fan_out))
        # stored transposed: [in, out]
        w_t = std * jax.random.normal(kw, (fan_in, fan_out), jnp.float32)
        # PyTorch Linear default bias init: U(-1/sqrt(fan_in), 1/sqrt(fan_in))
        bound = 1.0 / jnp.sqrt(fan_in)
        b = jax.random.uniform(kb, (1, fan_out), jnp.float32, -bound, bound)
        return w_t, b

    k1, k2, k3 = jax.random.split(key, 3)
    w1, b1 = linear(k1, IN_SIZE, MLP_SIZE)
    w2, b2 = linear(k2, MLP_SIZE, MLP_SIZE)
    w3, b3 = linear(k3, MLP_SIZE, STATE_SPACE_SIZE)
    return (w1, b1, w2, b2, w3, b3)


def reference_forward(hiddens, params):
    w1, b1, w2, b2, w3, b3 = params
    x = jnp.maximum(hiddens @ w1 + b1, 0.0)
    x = jnp.maximum(x @ w2 + b2, 0.0)
    return x @ w3 + b3


if __name__ == "__main__":
    key = jax.random.PRNGKey(0)
    kp, kx = jax.random.split(key)
    params = init_params(kp)

    # Small batch that is NOT a multiple of the tile -> exercises padding and
    # the multi-step grid path.
    B = 72
    hiddens = jax.random.normal(kx, (B, IN_SIZE), jnp.float32)

    out = jax.block_until_ready(reconstruction_forward(hiddens, params))
    ref = reference_forward(hiddens, params)

    assert out.shape == (B, STATE_SPACE_SIZE)
    assert out.dtype == jnp.float32
    # bf16 matmul inputs (f32 accumulate) -> loosened tolerance vs f32 reference.
    max_err = float(jnp.max(jnp.abs(out - ref)))
    assert jnp.allclose(out, ref, atol=5e-2, rtol=5e-2), max_err

    print("KERNEL_OK")
</pallas_src>

<mosaic_0001>
module attributes {stable_mosaic.version = 11 : i64} {
  func.func @_mlp_kernel(%arg0: i32, %arg1: memref<48x32xbf16, #tpu.memory_space<vmem>>, %arg2: memref<32x32xbf16, #tpu.memory_space<vmem>>, %arg3: memref<1x32xf32, #tpu.memory_space<vmem>>, %arg4: memref<32x32xbf16, #tpu.memory_space<vmem>>, %arg5: memref<1x32xf32, #tpu.memory_space<vmem>>, %arg6: memref<32x16xbf16, #tpu.memory_space<vmem>>, %arg7: memref<1x16xf32, #tpu.memory_space<vmem>>, %arg8: memref<48x16xf32, #tpu.memory_space<vmem>>) attributes {dimension_semantics = [#tpu.dimension_semantics<parallel>], iteration_bounds = array<i64: 2>, scalar_prefetch = 0 : i64, scratch_operands = 0 : i64, tpu.core_type = #tpu.core_type<tc>, window_params = [{transform_indices = @transform_0, window_bounds = array<i64: 48, 32>}, {pipeline_mode = #tpu.pipeline_mode<synchronous>, transform_indices = @transform_1, window_bounds = array<i64: 32, 32>}, {pipeline_mode = #tpu.pipeline_mode<synchronous>, transform_indices = @transform_2, window_bounds = array<i64: 1, 32>}, {pipeline_mode = #tpu.pipeline_mode<synchronous>, transform_indices = @transform_3, window_bounds = array<i64: 32, 32>}, {pipeline_mode = #tpu.pipeline_mode<synchronous>, transform_indices = @transform_4, window_bounds = array<i64: 1, 32>}, {pipeline_mode = #tpu.pipeline_mode<synchronous>, transform_indices = @transform_5, window_bounds = array<i64: 32, 16>}, {pipeline_mode = #tpu.pipeline_mode<synchronous>, transform_indices = @transform_6, window_bounds = array<i64: 1, 16>}, {transform_indices = @transform_7, window_bounds = array<i64: 48, 16>}]} {
    %c0 = arith.constant 0 : index
    %c0_0 = arith.constant 0 : index
    %0 = vector.load %arg1[%c0, %c0_0] : memref<48x32xbf16, #tpu.memory_space<vmem>>, vector<48x32xbf16>
    %c0_1 = arith.constant 0 : index
    %c0_2 = arith.constant 0 : index
    %1 = vector.load %arg2[%c0_1, %c0_2] : memref<32x32xbf16, #tpu.memory_space<vmem>>, vector<32x32xbf16>
    %cst = arith.constant dense<0.000000e+00> : vector<48x32xf32>
    %2 = tpu.matmul %0, %1, %cst {dimension_numbers = #tpu.dot_dimension_numbers<[1], [0], [0], [1], [0, 0, 1, 1], [], []>} : vector<48x32xbf16>, vector<32x32xbf16>, vector<48x32xf32> -> vector<48x32xf32>
    %c0_3 = arith.constant 0 : index
    %c0_4 = arith.constant 0 : index
    %3 = vector.load %arg3[%c0_3, %c0_4] : memref<1x32xf32, #tpu.memory_space<vmem>>, vector<1x32xf32>
    %4 = vector.broadcast %3 : vector<1x32xf32> to vector<48x32xf32>
    %5 = arith.addf %2, %4 : vector<48x32xf32>
    %cst_5 = arith.constant 0.000000e+00 : f32
    %6 = vector.broadcast %cst_5 : f32 to vector<48x32xf32>
    %7 = arith.maximumf %5, %6 : vector<48x32xf32>
    %8 = arith.truncf %7 : vector<48x32xf32> to vector<48x32xbf16>
    %c0_6 = arith.constant 0 : index
    %c0_7 = arith.constant 0 : index
    %9 = vector.load %arg4[%c0_6, %c0_7] : memref<32x32xbf16, #tpu.memory_space<vmem>>, vector<32x32xbf16>
    %cst_8 = arith.constant dense<0.000000e+00> : vector<48x32xf32>
    %10 = tpu.matmul %8, %9, %cst_8 {dimension_numbers = #tpu.dot_dimension_numbers<[1], [0], [0], [1], [0, 0, 1, 1], [], []>} : vector<48x32xbf16>, vector<32x32xbf16>, vector<48x32xf32> -> vector<48x32xf32>
    %c0_9 = arith.constant 0 : index
    %c0_10 = arith.constant 0 : index
    %11 = vector.load %arg5[%c0_9, %c0_10] : memref<1x32xf32, #tpu.memory_space<vmem>>, vector<1x32xf32>
    %12 = vector.broadcast %11 : vector<1x32xf32> to vector<48x32xf32>
    %13 = arith.addf %10, %12 : vector<48x32xf32>
    %cst_11 = arith.constant 0.000000e+00 : f32
    %14 = vector.broadcast %cst_11 : f32 to vector<48x32xf32>
    %15 = arith.maximumf %13, %14 : vector<48x32xf32>
    %16 = arith.truncf %15 : vector<48x32xf32> to vector<48x32xbf16>
    %c0_12 = arith.constant 0 : index
    %c0_13 = arith.constant 0 : index
    %17 = vector.load %arg6[%c0_12, %c0_13] : memref<32x16xbf16, #tpu.memory_space<vmem>>, vector<32x16xbf16>
    %cst_14 = arith.constant dense<0.000000e+00> : vector<48x16xf32>
    %18 = tpu.matmul %16, %17, %cst_14 {dimension_numbers = #tpu.dot_dimension_numbers<[1], [0], [0], [1], [0, 0, 1, 1], [], []>} : vector<48x32xbf16>, vector<32x16xbf16>, vector<48x16xf32> -> vector<48x16xf32>
    %c0_15 = arith.constant 0 : index
    %c0_16 = arith.constant 0 : index
    %19 = vector.load %arg7[%c0_15, %c0_16] : memref<1x16xf32, #tpu.memory_space<vmem>>, vector<1x16xf32>
    %20 = vector.broadcast %19 : vector<1x16xf32> to vector<48x16xf32>
    %21 = arith.addf %18, %20 : vector<48x16xf32>
    %c0_17 = arith.constant 0 : index
    %c0_18 = arith.constant 0 : index
    %22 = vector.load %arg8[%c0_17, %c0_18] : memref<48x16xf32, #tpu.memory_space<vmem>>, vector<48x16xf32>
    tpu.vector_store %arg8[%c0_17, %c0_18], %21 {strides = array<i32>} : memref<48x16xf32, #tpu.memory_space<vmem>>, vector<48x16xf32>,
    return
  }
  func.func @transform_0(%arg0: i32) -> (i32, i32) {
    %c0_i32 = arith.constant 0 : i32
    %c0_i32_0 = arith.constant 0 : i32
    return %arg0, %c0_i32 : i32, i32
  }
  func.func @transform_1(%arg0: i32) -> (i32, i32) {
    %c0_i32 = arith.constant 0 : i32
    %c0_i32_0 = arith.constant 0 : i32
    %c0_i32_1 = arith.constant 0 : i32
    return %c0_i32, %c0_i32_0 : i32, i32
  }
  func.func @transform_2(%arg0: i32) -> (i32, i32) {
    %c0_i32 = arith.constant 0 : i32
    %c0_i32_0 = arith.constant 0 : i32
    %c0_i32_1 = arith.constant 0 : i32
    return %c0_i32, %c0_i32_0 : i32, i32
  }
  func.func @transform_3(%arg0: i32) -> (i32, i32) {
    %c0_i32 = arith.constant 0 : i32
    %c0_i32_0 = arith.constant 0 : i32
    %c0_i32_1 = arith.constant 0 : i32
    return %c0_i32, %c0_i32_0 : i32, i32
  }
  func.func @transform_4(%arg0: i32) -> (i32, i32) {
    %c0_i32 = arith.constant 0 : i32
    %c0_i32_0 = arith.constant 0 : i32
    %c0_i32_1 = arith.constant 0 : i32
    return %c0_i32, %c0_i32_0 : i32, i32
  }
  func.func @transform_5(%arg0: i32) -> (i32, i32) {
    %c0_i32 = arith.constant 0 : i32
    %c0_i32_0 = arith.constant 0 : i32
    %c0_i32_1 = arith.constant 0 : i32
    return %c0_i32, %c0_i32_0 : i32, i32
  }
  func.func @transform_6(%arg0: i32) -> (i32, i32) {
    %c0_i32 = arith.constant 0 : i32
    %c0_i32_0 = arith.constant 0 : i32
    %c0_i32_1 = arith.constant 0 : i32
    return %c0_i32, %c0_i32_0 : i32, i32
  }
  func.func @transform_7(%arg0: i32) -> (i32, i32) {
    %c0_i32 = arith.constant 0 : i32
    %c0_i32_0 = arith.constant 0 : i32
    return %arg0, %c0_i32 : i32, i32
  }
}

</mosaic_0001>

<llo_original>
// kernel: reconstruction_forward.1
$region0: #{reconstruction_forward.1}
  #allocation0 [shape = 'u32[]', space=smem, size = 0x4, offset = 0x4, fixed_abs, tag = 'smem constant byte address 0x4 - core index']
  #allocation1 [shape = 'u32[72,128]{1,0:T(1,128)}', space=vmem, size = 0x9000, scoped, tag = 'internal scratch']
  %s0 = inlined_call_operand.vmem [shape: bf16[96,32], index: 0, kind: input, shape index: {}]
  %s1 = inlined_call_operand.vmem [shape: bf16[32,32], index: 1, kind: input, shape index: {}]
  %s2 = inlined_call_operand.vmem [shape: f32[1,32], index: 2, kind: input, shape index: {}]
  %s3 = inlined_call_operand.vmem [shape: bf16[32,32], index: 3, kind: input, shape index: {}]
  %s4 = inlined_call_operand.vmem [shape: f32[1,32], index: 4, kind: input, shape index: {}]
  %s5 = inlined_call_operand.vmem [shape: bf16[32,16], index: 5, kind: input, shape index: {}]
  %s6 = inlined_call_operand.vmem [shape: f32[1,16], index: 6, kind: input, shape index: {}]
  %s7 = inlined_call_operand.vmem [shape: f32[96,16], index: 7, kind: output, shape index: {}]
  %s8 = sld [smem:[#allocation0]]
  $region61: #{reconstruction_forward.1} parent=0
    _
  %s10 = ssub.s32 1, %s8
  %s11 = scalar_select 0, %s10, %s8
  loop: start=0, step=1, limit=4
  $region2: #{reconstruction_forward.1} parent=0 // loop_pre_header
    _
  $region3: #{reconstruction_forward.1} parent=0 // loop_header
    %s13 = sphi 0, %s17
    %p14 = scmp.ge.s32.totalorder %s13, 4
    %s23 = sphi 0, %s25
    %s26 = sphi 0, %s23
    %s27 = sphi 0, %s26
    %s43 = sphi 0, %s27
    %s47 = sphi 0, %s47
    %s49 = sphi 0, %s47
    %s50 = sphi 0, %s49
    %s64 = sphi 0, %s50
    %s68 = sphi 0, %s68
    %s70 = sphi 0, %s68
    %s71 = sphi 0, %s70
    %s85 = sphi 0, %s71
    %s89 = sphi 0, %s89
    %s91 = sphi 0, %s89
    %s92 = sphi 0, %s91
    %s106 = sphi 0, %s92
    %s110 = sphi 0, %s110
    %s112 = sphi 0, %s110
    %s113 = sphi 0, %s112
    %s127 = sphi 0, %s113
    %s131 = sphi 0, %s131
    %s133 = sphi 0, %s131
    %s134 = sphi 0, %s133
    %s148 = sphi 0, %s134
    %s152 = sphi 0, %s152
    %s154 = sphi 0, %s152
    %s155 = sphi 0, %s154
    %s169 = sphi 0, %s155
    %s175 = sphi 0, %s177
    %s178 = sphi 0, %s175
    %s179 = sphi 0, %s178
    %s195 = sphi 0, %s179
  $region4: #{reconstruction_forward.1} parent=0 // loop_header_branch
    %16 = sbr.rel (%p14) target = $region8
  $region5: #{reconstruction_forward.1} parent=0 // loop_body
    %s18 = ssub.s32 %s13, 1
    %s19 = ssub.s32 %s13, 2
    %s20 = sadd.s32 %s13, 1
    %s21 = ssub.s32 %s13, %s20
    %p22 = scmp.eq.s32.totalorder %s21, 0
    %s24 = sadd.s32 %s23, 1
    %s25 = scalar_select %p22, %s23, %s24
    %p28 = pneg %p22
    %p29 = scmp.eq.s32.totalorder %s13, 1
    %p30 = por %p28, %p29
    %p31 = scmp.ne.s32.totalorder %s23, %s26
    %p32 = scmp.eq.s32.totalorder %s13, 0
    %p33 = por %p31, %p32
    %p34 = scmp.ne.s32.totalorder %s23, %s26
    %p35 = scmp.eq.s32.totalorder %s18, 1
    %p36 = por %p34, %p35
    %p37 = scmp.ne.s32.totalorder %s26, %s27
    %p38 = scmp.eq.s32.totalorder %s18, 0
    %p39 = por %p37, %p38
    %p40 = scmp.ne.s32.totalorder %s26, %s27
    %p41 = scmp.eq.s32.totalorder %s19, 1
    %p42 = por %p40, %p41
    %p44 = scmp.ne.s32.totalorder %s27, %s43
    %p45 = scmp.eq.s32.totalorder %s19, 0
    %p46 = por %p44, %p45
    %s48 = sadd.s32 %s47, 1
    %p51 = scmp.eq.s32.totalorder %s13, 1
    %p52 = scmp.ne.s32.totalorder %s47, %s49
    %p53 = scmp.eq.s32.totalorder %s13, 0
    %p54 = por %p52, %p53
    %p55 = scmp.ne.s32.totalorder %s47, %s49
    %p56 = scmp.eq.s32.totalorder %s18, 1
    %p57 = por %p55, %p56
    %p58 = scmp.ne.s32.totalorder %s49, %s50
    %p59 = scmp.eq.s32.totalorder %s18, 0
    %p60 = por %p58, %p59
    %p61 = scmp.ne.s32.totalorder %s49, %s50
    %p62 = scmp.eq.s32.totalorder %s19, 1
    %p63 = por %p61, %p62
    %p65 = scmp.ne.s32.totalorder %s50, %s64
    %p66 = scmp.eq.s32.totalorder %s19, 0
    %p67 = por %p65, %p66
    %s69 = sadd.s32 %s68, 1
    %p72 = scmp.eq.s32.totalorder %s13, 1
    %p73 = scmp.ne.s32.totalorder %s68, %s70
    %p74 = scmp.eq.s32.totalorder %s13, 0
    %p75 = por %p73, %p74
    %p76 = scmp.ne.s32.totalorder %s68, %s70
    %p77 = scmp.eq.s32.totalorder %s18, 1
    %p78 = por %p76, %p77
    %p79 = scmp.ne.s32.totalorder %s70, %s71
    %p80 = scmp.eq.s32.totalorder %s18, 0
    %p81 = por %p79, %p80
    %p82 = scmp.ne.s32.totalorder %s70, %s71
    %p83 = scmp.eq.s32.totalorder %s19, 1
    %p84 = por %p82, %p83
    %p86 = scmp.ne.s32.totalorder %s71, %s85
    %p87 = scmp.eq.s32.totalorder %s19, 0
    %p88 = por %p86, %p87
    %s90 = sadd.s32 %s89, 1
    %p93 = scmp.eq.s32.totalorder %s13, 1
    %p94 = scmp.ne.s32.totalorder %s89, %s91
    %p95 = scmp.eq.s32.totalorder %s13, 0
    %p96 = por %p94, %p95
    %p97 = scmp.ne.s32.totalorder %s89, %s91
    %p98 = scmp.eq.s32.totalorder %s18, 1
    %p99 = por %p97, %p98
    %p100 = scmp.ne.s32.totalorder %s91, %s92
    %p101 = scmp.eq.s32.totalorder %s18, 0
    %p102 = por %p100, %p101
    %p103 = scmp.ne.s32.totalorder %s91, %s92
    %p104 = scmp.eq.s32.totalorder %s19, 1
    %p105 = por %p103, %p104
    %p107 = scmp.ne.s32.totalorder %s92, %s106
    %p108 = scmp.eq.s32.totalorder %s19, 0
    %p109 = por %p107, %p108
    %s111 = sadd.s32 %s110, 1
    %p114 = scmp.eq.s32.totalorder %s13, 1
    %p115 = scmp.ne.s32.totalorder %s110, %s112
    %p116 = scmp.eq.s32.totalorder %s13, 0
    %p117 = por %p115, %p116
    %p118 = scmp.ne.s32.totalorder %s110, %s112
    %p119 = scmp.eq.s32.totalorder %s18, 1
    %p120 = por %p118, %p119
    %p121 = scmp.ne.s32.totalorder %s112, %s113
    %p122 = scmp.eq.s32.totalorder %s18, 0
    %p123 = por %p121, %p122
    %p124 = scmp.ne.s32.totalorder %s112, %s113
    %p125 = scmp.eq.s32.totalorder %s19, 1
    %p126 = por %p124, %p125
    %p128 = scmp.ne.s32.totalorder %s113, %s127
    %p129 = scmp.eq.s32.totalorder %s19, 0
    %p130 = por %p128, %p129
    %s132 = sadd.s32 %s131, 1
    %p135 = scmp.eq.s32.totalorder %s13, 1
    %p136 = scmp.ne.s32.totalorder %s131, %s133
    %p137 = scmp.eq.s32.totalorder %s13, 0
    %p138 = por %p136, %p137
    %p139 = scmp.ne.s32.totalorder %s131, %s133
    %p140 = scmp.eq.s32.totalorder %s18, 1
    %p141 = por %p139, %p140
    %p142 = scmp.ne.s32.totalorder %s133, %s134
    %p143 = scmp.eq.s32.totalorder %s18, 0
    %p144 = por %p142, %p143
    %p145 = scmp.ne.s32.totalorder %s133, %s134
    %p146 = scmp.eq.s32.totalorder %s19, 1
    %p147 = por %p145, %p146
    %p149 = scmp.ne.s32.totalorder %s134, %s148
    %p150 = scmp.eq.s32.totalorder %s19, 0
    %p151 = por %p149, %p150
    %s153 = sadd.s32 %s152, 1
    %p156 = scmp.eq.s32.totalorder %s13, 1
    %p157 = scmp.ne.s32.totalorder %s152, %s154
    %p158 = scmp.eq.s32.totalorder %s13, 0
    %p159 = por %p157, %p158
    %p160 = scmp.ne.s32.totalorder %s152, %s154
    %p161 = scmp.eq.s32.totalorder %s18, 1
    %p162 = por %p160, %p161
    %p163 = scmp.ne.s32.totalorder %s154, %s155
    %p164 = scmp.eq.s32.totalorder %s18, 0
    %p165 = por %p163, %p164
    %p166 = scmp.ne.s32.totalorder %s154, %s155
    %p167 = scmp.eq.s32.totalorder %s19, 1
    %p168 = por %p166, %p167
    %p170 = scmp.ne.s32.totalorder %s155, %s169
    %p171 = scmp.eq.s32.totalorder %s19, 0
    %p172 = por %p170, %p171
    %s173 = ssub.s32 %s13, %s20
    %p174 = scmp.eq.s32.totalorder %s173, 0
    %s176 = sadd.s32 %s175, 1
    %s177 = scalar_select %p174, %s175, %s176
    %p180 = pneg %p174
    %p181 = scmp.eq.s32.totalorder %s13, 1
    %p182 = por %p180, %p181
    %p183 = scmp.ne.s32.totalorder %s175, %s178
    %p184 = scmp.eq.s32.totalorder %s13, 0
    %p185 = por %p183, %p184
    %p186 = scmp.ne.s32.totalorder %s175, %s178
    %p187 = scmp.eq.s32.totalorder %s18, 1
    %p188 = por %p186, %p187
    %p189 = scmp.ne.s32.totalorder %s178, %s179
    %p190 = scmp.eq.s32.totalorder %s18, 0
    %p191 = por %p189, %p190
    %p192 = scmp.ne.s32.totalorder %s178, %s179
    %p193 = scmp.eq.s32.totalorder %s19, 1
    %p194 = por %p192, %p193
    %p196 = scmp.ne.s32.totalorder %s179, %s195
    %p197 = scmp.eq.s32.totalorder %s19, 0
    %p198 = por %p196, %p197
    %p199 = scmp.le.s32.totalorder 1, %s13
    %p200 = scmp.lt.s32.totalorder %s13, 3
    %p201 = pnand %p199, %p200
    %p202 = pneg %p201
    // Predicated region
    $region9: #{reconstruction_forward.1} parent=5 // pred_check
      _
    $region10: #{reconstruction_forward.1} parent=5 // pred_check_branch
      %204 = sbr.rel (%p201) target = $region12
    $region11: #{reconstruction_forward.1} parent=5 // pred_region
      %s205 = ssub.s32 %s13, 1
      // Predicated region
      $region13: #{reconstruction_forward.1} parent=11 // pred_check
        %p206 = pneg %p60
      $region14: #{reconstruction_forward.1} parent=11 // pred_check_branch
        %208 = sbr.rel (%p206) target = $region16
      $region15: #{reconstruction_forward.1} parent=11 // pred_region
        _
      $region16: #{reconstruction_forward.1} parent=11 // pred_fallthru
        _
      // Predicated region
      $region17: #{reconstruction_forward.1} parent=11 // pred_check
        %p209 = pneg %p81
      $region18: #{reconstruction_forward.1} parent=11 // pred_check_branch
        %211 = sbr.rel (%p209) target = $region20
      $region19: #{reconstruction_forward.1} parent=11 // pred_region
        _
      $region20: #{reconstruction_forward.1} parent=11 // pred_fallthru
        _
      // Predicated region
      $region21: #{reconstruction_forward.1} parent=11 // pred_check
        %p212 = pneg %p102
      $region22: #{reconstruction_forward.1} parent=11 // pred_check_branch
        %214 = sbr.rel (%p212) target = $region24
      $region23: #{reconstruction_forward.1} parent=11 // pred_region
        _
      $region24: #{reconstruction_forward.1} parent=11 // pred_fallthru
        _
      // Predicated region
      $region25: #{reconstruction_forward.1} parent=11 // pred_check
        %p215 = pneg %p123
      $region26: #{reconstruction_forward.1} parent=11 // pred_check_branch
        %217 = sbr.rel (%p215) target = $region28
      $region27: #{reconstruction_forward.1} parent=11 // pred_region
        _
      $region28: #{reconstruction_forward.1} parent=11 // pred_fallthru
        _
      // Predicated region
      $region29: #{reconstruction_forward.1} parent=11 // pred_check
        %p218 = pneg %p144
      $region30: #{reconstruction_forward.1} parent=11 // pred_check_branch
        %220 = sbr.rel (%p218) target = $region32
      $region31: #{reconstruction_forward.1} parent=11 // pred_region
        _
      $region32: #{reconstruction_forward.1} parent=11 // pred_fallthru
        _
      // Predicated region
      $region33: #{reconstruction_forward.1} parent=11 // pred_check
        %p221 = pneg %p165
      $region34: #{reconstruction_forward.1} parent=11 // pred_check_branch
        %223 = sbr.rel (%p221) target = $region36
      $region35: #{reconstruction_forward.1} parent=11 // pred_region
        _
      $region36: #{reconstruction_forward.1} parent=11 // pred_fallthru
        _
    $region12: #{reconstruction_forward.1} parent=5 // pred_fallthru
      _
    %p224 = scmp.lt.s32.totalorder %s13, 2
    // Predicated region
    $region37: #{reconstruction_forward.1} parent=5 // pred_check
      %p225 = pneg %p224
    $region38: #{reconstruction_forward.1} parent=5 // pred_check_branch
      %227 = sbr.rel (%p225) target = $region40
    $region39: #{reconstruction_forward.1} parent=5 // pred_region
      // Predicated region
      $region41: #{reconstruction_forward.1} parent=39 // pred_check
        %p228 = pneg %p33
      $region42: #{reconstruction_forward.1} parent=39 // pred_check_branch
        %230 = sbr.rel (%p228) target = $region44
      $region43: #{reconstruction_forward.1} parent=39 // pred_region
        %s231 = smul.u32 6, %s13
        %p232 = scmp.lt.s32.totalorder %s231, 11
        %s233 = scalar_select %p232, %s231, 11
        %s234 = smul.addr %s233, 4
        %s235 = scalar_lea.vmem %s0, %s234
        %s236 = smul.u32 6, %s13
      $region44: #{reconstruction_forward.1} parent=39 // pred_fallthru
        _
    $region40: #{reconstruction_forward.1} parent=5 // pred_fallthru
      _
    %p237 = scmp.le.s32.totalorder 1, %s13
    %p238 = scmp.lt.s32.totalorder %s13, 3
    %p239 = pnand %p237, %p238
    %p240 = pneg %p239
    // Predicated region
    $region45: #{reconstruction_forward.1} parent=5 // pred_check
      _
    $region46: #{reconstruction_forward.1} parent=5 // pred_check_branch
      %242 = sbr.rel (%p239) target = $region48
    $region47: #{reconstruction_forward.1} parent=5 // pred_region
      %s243 = ssub.s32 %s13, 1
      %s244 = smul.u32 6, %s18
      %p245 = scmp.lt.s32.totalorder %s244, 11
      %s246 = scalar_select %p245, %s244, 11
      %s247 = smul.addr %s246, 4
      %s248 = scalar_lea.vmem %s0, %s247
      %p249 = pneg %p39
      %p250 = pneg %p36
      %p251 = pneg %p60
      %p252 = pneg %p57
      %p253 = pneg %p81
      %p254 = pneg %p78
      %p255 = pneg %p102
      %p256 = pneg %p99
      %p257 = pneg %p123
      %p258 = pneg %p120
      %p259 = pneg %p144
      %p260 = pneg %p141
      %p261 = pneg %p165
      %p262 = pneg %p162
      %p263 = pneg %p191
      %p264 = pneg %p188
      %s265 = smul.u32 6, %s18
      %p266 = scmp.lt.s32.totalorder %s265, 11
      %s267 = scalar_select %p266, %s265, 11
      %s268 = smul.addr %s267, 8
      %s269 = scalar_lea.vmem %s7, %s268
      %s270 = smul.u32 6, %s18
      %p271 = scmp.lt.s32.totalorder %s270, 11
      %s272 = scalar_select %p271, %s270, 11
      %s273 = smul.addr %s272, 4
      %s274 = scalar_lea.vmem %s0, %s273
      %s275 = smul.u32 6, %s18
      %s276 = smul.u32 6, %s18
      %p277 = scmp.lt.s32.totalorder %s276, 11
      %s278 = scalar_select %p277, %s276, 11
      %s279 = smul.addr %s278, 8
      %s280 = scalar_lea.vmem %s7, %s279
      %s281 = smul.u32 6, %s18
      %v283 = vld [vmem:[%s274] sm:$0xf]
      %v284 = vld [vmem:[%s274 + $0x4] sm:$0xf]
      %v285 = vld [vmem:[%s274 + $0x8] sm:$0xf]
      %v286 = vld [vmem:[%s274 + $0xc] sm:$0xf]
      %v287 = vld [vmem:[%s274 + $0x10] sm:$0xf]
      %v288 = vld [vmem:[%s274 + $0x14] sm:$0xf]
      %v289 = vld [vmem:[%s1] sm:$0xf]
      %v290 = vld [vmem:[%s1 + $0x4] sm:$0xf]
      %v291 = vld [vmem:[%s1 + $0x8] sm:$0xf]
      %v292 = vld [vmem:[%s1 + $0xc] sm:$0xf]
      %v293 = vld [vmem:[%s2] sm:$0x1]
      %v295 = vperm.slane %v293, 0
      %v303 = vunpack.c.l.b16 %v283
      %v304 = vunpack.c.l.b16 %v284
      %v305 = vunpack.c.l.b16 %v285
      %v306 = vunpack.c.l.b16 %v286
      %v307 = vunpack.c.l.b16 %v287
      %v308 = vunpack.c.l.b16 %v288
      %v309 = vpack.c.b16 %v304, %v303
      %v310 = vpack.c.b16 %v306, %v305
      %v311 = vpack.c.b16 %v308, %v307
      %v316 = vunpack.c.l.b16 %v289
      %v317 = vunpack.c.l.b16 %v290
      %v318 = vunpack.c.l.b16 %v291
      %v319 = vunpack.c.l.b16 %v292
      %v320 = vpack.c.b16 %v317, %v316
      %v321 = vpack.c.b16 %v319, %v318
      %vm324 = vcmask 261120
      %v326 = vsel %vm324, %v309, 0
      %v329 = vsel %vm324, %v310, 0
      %v332 = vsel %vm324, %v311, 0
      %334 = vmatpush.bf16.msra.mxu0 0
      %335 = vmatpush.bf16.msra.mxu0 0
      %336 = vmatpush.bf16.msra.mxu0 0
      %337 = vmatpush.bf16.msra.mxu0 0
      %338 = vmatpush.bf16.msra.mxu0 0
      %339 = vmatpush.bf16.msra.mxu0 0
      %340 = vmatpush.bf16.msra.mxu0 %v321
      %341 = vmatpush.bf16.msra.mxu0 %v320
      %342 = vmatmul.bf16.gmra.mxu0 %v326
      %v343 = vpop.f32.mrf.mxu0
      %v344 = vadd.f32 %v295, %v343
      %v345 = vpop.f32.mrf.mxu0
      %v346 = vadd.f32 %v295, %v345
      %347 = vmatmul.bf16.gmra.mxu0 %v329
      %v348 = vpop.f32.mrf.mxu0
      %v349 = vadd.f32 %v295, %v348
      %v350 = vpop.f32.mrf.mxu0
      %v351 = vadd.f32 %v295, %v350
      %352 = vmatmul.bf16.gmra.mxu0 %v332
      %v353 = vpop.f32.mrf.mxu0
      %v354 = vadd.f32 %v295, %v353
      %v355 = vpop.f32.mrf.mxu0
      %v356 = vadd.f32 %v295, %v355
      %357 = vdwg.mxu0
      %v358 = vmax.f32 %v344, 0.0
      %v359 = vmax.f32 %v346, 0.0
      %v360 = vmax.f32 %v349, 0.0
      %v361 = vmax.f32 %v351, 0.0
      %v362 = vmax.f32 %v354, 0.0
      %v363 = vmax.f32 %v356, 0.0
      %v364 = vpack.c.bf16 %v359, %v358
      %v365 = vpack.c.bf16 %v361, %v360
      %v366 = vpack.c.bf16 %v363, %v362
      %v367 = vld [vmem:[%s3] sm:$0xf]
      %v368 = vld [vmem:[%s3 + $0x4] sm:$0xf]
      %v369 = vld [vmem:[%s3 + $0x8] sm:$0xf]
      %v370 = vld [vmem:[%s3 + $0xc] sm:$0xf]
      %v371 = vld [vmem:[%s4] sm:$0x1]
      %v373 = vperm.slane %v371, 0
      %v379 = vunpack.c.l.b16 %v367
      %v380 = vunpack.c.l.b16 %v368
      %v381 = vunpack.c.l.b16 %v369
      %v382 = vunpack.c.l.b16 %v370
      %v383 = vpack.c.b16 %v380, %v379
      %v384 = vpack.c.b16 %v382, %v381
      %v388 = vsel %vm324, %v364, 0
      %v391 = vsel %vm324, %v365, 0
      %v394 = vsel %vm324, %v366, 0
      %396 = vmatpush.bf16.msra.mxu0 0
      %397 = vmatpush.bf16.msra.mxu0 0
      %398 = vmatpush.bf16.msra.mxu0 0
      %399 = vmatpush.bf16.msra.mxu0 0
      %400 = vmatpush.bf16.msra.mxu0 0
      %401 = vmatpush.bf16.msra.mxu0 0
      %402 = vmatpush.bf16.msra.mxu0 %v384
      %403 = vmatpush.bf16.msra.mxu0 %v383
      %404 = vmatmul.bf16.gmra.mxu0 %v388
      %v405 = vpop.f32.mrf.mxu0
      %v406 = vadd.f32 %v373, %v405
      %v407 = vpop.f32.mrf.mxu0
      %v408 = vadd.f32 %v373, %v407
      %409 = vmatmul.bf16.gmra.mxu0 %v391
      %v410 = vpop.f32.mrf.mxu0
      %v411 = vadd.f32 %v373, %v410
      %v412 = vpop.f32.mrf.mxu0
      %v413 = vadd.f32 %v373, %v412
      %414 = vmatmul.bf16.gmra.mxu0 %v394
      %v415 = vpop.f32.mrf.mxu0
      %v416 = vadd.f32 %v373, %v415
      %v417 = vpop.f32.mrf.mxu0
      %v418 = vadd.f32 %v373, %v417
      %419 = vdwg.mxu0
      %v420 = vmax.f32 %v406, 0.0
      %v421 = vmax.f32 %v408, 0.0
      %v422 = vmax.f32 %v411, 0.0
      %v423 = vmax.f32 %v413, 0.0
      %v424 = vmax.f32 %v416, 0.0
      %v425 = vmax.f32 %v418, 0.0
      %v426 = vpack.c.bf16 %v421, %v420
      %v427 = vpack.c.bf16 %v423, %v422
      %v428 = vpack.c.bf16 %v425, %v424
      %v429 = vld [vmem:[%s5] sm:$0xf]
      %v430 = vld [vmem:[%s5 + $0x4] sm:$0xf]
      %v431 = vld [vmem:[%s5 + $0x8] sm:$0xf]
      %v432 = vld [vmem:[%s5 + $0xc] sm:$0xf]
      %v433 = vld [vmem:[%s6] sm:$0x1]
      %v435 = vperm.slane %v433, 0
      %v441 = vunpack.c.l.b16 %v429
      %v442 = vunpack.c.l.b16 %v430
      %v443 = vunpack.c.l.b16 %v431
      %v444 = vunpack.c.l.b16 %v432
      %v445 = vpack.c.b16 %v442, %v441
      %v446 = vpack.c.b16 %v444, %v443
      %v450 = vsel %vm324, %v426, 0
      %v453 = vsel %vm324, %v427, 0
      %v456 = vsel %vm324, %v428, 0
      %458 = vmatpush.bf16.msra.mxu0 0
      %459 = vmatpush.bf16.msra.mxu0 0
      %460 = vmatpush.bf16.msra.mxu0 0
      %461 = vmatpush.bf16.msra.mxu0 0
      %462 = vmatpush.bf16.msra.mxu0 0
      %463 = vmatpush.bf16.msra.mxu0 0
      %464 = vmatpush.bf16.msra.mxu0 %v446
      %465 = vmatpush.bf16.msra.mxu0 %v445
      %466 = vmatmul.bf16.gmra.mxu0 %v450
      %v467 = vpop.f32.mrf.mxu0
      %v468 = vadd.f32 %v435, %v467
      %v469 = vpop.f32.mrf.mxu0
      %v470 = vadd.f32 %v435, %v469
      %471 = vmatmul.bf16.gmra.mxu0 %v453
      %v472 = vpop.f32.mrf.mxu0
      %v473 = vadd.f32 %v435, %v472
      %v474 = vpop.f32.mrf.mxu0
      %v475 = vadd.f32 %v435, %v474
      %476 = vmatmul.bf16.gmra.mxu0 %v456
      %v477 = vpop.f32.mrf.mxu0
      %v478 = vadd.f32 %v435, %v477
      %v479 = vpop.f32.mrf.mxu0
      %v480 = vadd.f32 %v435, %v479
      %481 = vdwg.mxu0
      %vm482 = vcmask 130048
      %483 = vst.msk [vmem:[%s280] sm:$0xff] %vm482, %v468
      %484 = vst.msk [vmem:[%s280 + $0x8] sm:$0xff] %vm482, %v470
      %485 = vst.msk [vmem:[%s280 + $0x10] sm:$0xff] %vm482, %v473
      %486 = vst.msk [vmem:[%s280 + $0x18] sm:$0xff] %vm482, %v475
      %487 = vst.msk [vmem:[%s280 + $0x20] sm:$0xff] %vm482, %v478
      %488 = vst.msk [vmem:[%s280 + $0x28] sm:$0xff] %vm482, %v480
      %s489 = smul.u32 6, %s18
      %p490 = scmp.lt.s32.totalorder %s489, 11
      %s491 = scalar_select %p490, %s489, 11
      %s492 = smul.addr %s491, 8
      %s493 = scalar_lea.vmem %s7, %s492
      // Predicated region
      $region49: #{reconstruction_forward.1} parent=47 // pred_check
        %p494 = pneg %p188
      $region50: #{reconstruction_forward.1} parent=47 // pred_check_branch
        %496 = sbr.rel (%p494) target = $region52
      $region51: #{reconstruction_forward.1} parent=47 // pred_region
        %s497 = smul.u32 6, %s18
      $region52: #{reconstruction_forward.1} parent=47 // pred_fallthru
        _
    $region48: #{reconstruction_forward.1} parent=5 // pred_fallthru
      _
    %p498 = scmp.le.s32.totalorder 2, %s13
    // Predicated region
    $region53: #{reconstruction_forward.1} parent=5 // pred_check
      %p499 = pneg %p498
    $region54: #{reconstruction_forward.1} parent=5 // pred_check_branch
      %501 = sbr.rel (%p499) target = $region56
    $region55: #{reconstruction_forward.1} parent=5 // pred_region
      %s502 = ssub.s32 %s13, 2
      // Predicated region
      $region57: #{reconstruction_forward.1} parent=55 // pred_check
        %p503 = pneg %p194
      $region58: #{reconstruction_forward.1} parent=55 // pred_check_branch
        %505 = sbr.rel (%p503) target = $region60
      $region59: #{reconstruction_forward.1} parent=55 // pred_region
        %s506 = smul.u32 6, %s19
        %p507 = scmp.lt.s32.totalorder %s506, 11
        %s508 = scalar_select %p507, %s506, 11
        %s509 = smul.addr %s508, 8
        %s510 = scalar_lea.vmem %s7, %s509
      $region60: #{reconstruction_forward.1} parent=55 // pred_fallthru
        _
    $region56: #{reconstruction_forward.1} parent=5 // pred_fallthru
      _
  $region6: #{reconstruction_forward.1} parent=0 // loop_footer
    %s17 = sadd.s32 1, %s13
  $region7: #{reconstruction_forward.1} parent=0 // loop_footer_branch
    %12 = sbr.rel target = $region3
  $region8: #{reconstruction_forward.1} parent=0 // loop_exit
    _

</llo_original>
